<compile_context>
chip_gen: v6e
topology: v6e:2x2x1
jax: 0.10.0
libtpu: 0.0.40
codegen_flags: <defaults>
</compile_context>

<pallas_src>
import functools

import jax
import jax.numpy as jnp
from jax.experimental import pallas as pl
from jax.experimental.pallas import tpu as pltpu

_LANES = 128
_SUBLANES = 8


def _round_up(x, m):
    return ((x + m - 1) // m) * m


def _chip_config():
    """Returns (num_tensorcores, target per-input block bytes) for this chip."""
    kind = ""
    try:
        kind = jax.devices()[0].device_kind.lower()
    except Exception:  # no device info -> conservative defaults
        pass
    # Only v7x (and the older megacore parts v4 / v5p) have 2 TensorCores per
    # chip; v5e / v6e are single-TC, where a 2-way split only costs a possible
    # duplicated tile + per-step masking.
    multi_tc = any(tag in kind for tag in ("v7", "v4", "v5p"))
    # v7x HBM is ~3.2 TB/s, so use bigger blocks there to clear the ~0.35 us
    # per-grid-step overhead; 2 MiB per input is already ~90% of roofline on
    # v5e / v6e.
    block_bytes = (4 << 20) if "v7" in kind else (2 << 20)
    return (2 if multi_tc else 1), block_bytes


def _rmse_partial_kernel(yhat_ref, y_ref, out_ref, *,
                         tile_rows, acc_rows, rows, steps, mask_needed):
    p = pl.program_id(0)   # parallel axis (megacore split on multi-TC chips)
    s = pl.program_id(1)   # arbitrary (reduction) axis

    @pl.when(s == 0)
    def _():
        out_ref[...] = jnp.zeros_like(out_ref)

    # Upcast inside the kernel (VPU); inputs stream HBM->VMEM in native dtype.
    d = yhat_ref[...].astype(jnp.float32) - y_ref[...].astype(jnp.float32)
    sq = d * d

    folds = tile_rows // acc_rows

    def _accumulate(vals):
        # Fold (tile_rows, 128) -> (acc_rows, 128) with element-wise VPU adds
        # only; acc_rows independent accumulator rows keep the 4 VALU slots
        # busier than a single (8,128) chain.
        out_ref[...] += vals.reshape(folds, acc_rows, _LANES).sum(axis=0)[None]

    if mask_needed:
        # Logical (UNclamped) tile index. Partial last tiles and duplicated
        # (grid-clamped) tiles get row-masked. NOTE: the mask must use the
        # unclamped index `t` so duplicated tiles see valid <= 0 and contribute
        # exactly zero.
        t = p * steps + s
        is_full = (t + 1) * tile_rows <= rows

        @pl.when(is_full)
        def _():  # hot path: no iota / compare / select
            _accumulate(sq)

        @pl.when(jnp.logical_not(is_full))
        def _():  # cold path: at most one tile per core
            valid = rows - t * tile_rows
            row_idx = jax.lax.broadcasted_iota(jnp.int32, sq.shape, 0)
            _accumulate(jnp.where(row_idx < valid, sq, jnp.float32(0.0)))
    else:
        _accumulate(sq)


def rmse_loss(yhat, y, *, num_parallel=None, target_block_bytes=None):
    """RMSE = sqrt(mean((yhat - y)^2)), computed with a Pallas TPU kernel."""
    assert yhat.shape == y.shape, "yhat and y must have the same shape"
    n = yhat.size  # true element count for the mean (static Python int)
    assert n > 0

    auto_cores, auto_block = _chip_config()
    if num_parallel is None:
        num_parallel = auto_cores
    if target_block_bytes is None:
        target_block_bytes = auto_block

    flat_yhat = yhat.reshape(-1)  # free bitcast; native dtype preserved
    flat_y = y.reshape(-1)

    full = (n // _LANES) * _LANES  # elements handled by the kernel
    tail = n - full                # <128 leftover elements

    total = jnp.float32(0.0)

    if full > 0:
        itemsize = jnp.dtype(yhat.dtype).itemsize
        rows = full // _LANES

        # dtype-aware tile: ~target_block_bytes of input per array per step.
        tile_rows = max(
            _SUBLANES,
            _round_up(target_block_bytes // (_LANES * itemsize), _SUBLANES))
        tile_rows_eff = min(tile_rows, _round_up(rows, _SUBLANES))
        acc_rows = 32 if tile_rows_eff % 32 == 0 else _SUBLANES

        total_tiles = -(-rows // tile_rows_eff)

        # Only split the grid if there are 2 TensorCores AND enough tiles.
        if total_tiles < 2 * num_parallel:
            num_parallel = 1
        steps = -(-total_tiles // num_parallel)
        padded_tiles = steps * num_parallel
        mask_needed = (padded_tiles != total_tiles) or (rows % tile_rows_eff != 0)

        if padded_tiles == total_tiles:
            def in_idx(p, s):
                return (p * steps + s, 0)
        else:
            last_tile = total_tiles - 1

            def in_idx(p, s):
                # Clamp over-provisioned grid steps to a valid tile so the DMA
                # stays in-bounds; the in-kernel mask (on the unclamped index)
                # zeroes their contribution.
                return (jnp.minimum(p * steps + s, last_tile), 0)

        if full != n:
            # TODO(synk): lane-ragged sizes still pay one prefix-slice copy per
            # input here (the <128-element tail itself is reduced below in the
            # wrapper, so there is no full-array jnp.pad anymore).
            yhat2d = flat_yhat[:full].reshape(rows, _LANES)
            y2d = flat_y[:full].reshape(rows, _LANES)
        else:
            yhat2d = flat_yhat.reshape(rows, _LANES)
            y2d = flat_y.reshape(rows, _LANES)

        in_spec = pl.BlockSpec((tile_rows_eff, _LANES), in_idx)
        out_spec = pl.BlockSpec((1, acc_rows, _LANES), lambda p, s: (p, 0, 0))

        block_bytes = tile_rows_eff * _LANES * itemsize
        block_f32_bytes = tile_rows_eff * _LANES * 4
        out_bytes = num_parallel * acc_rows * _LANES * 4
        # 2 inputs x double buffer + f32 element-wise temps + headroom.
        # Explicit limit: above v5e's 16 MiB scoped default, below v7x's
        # 64 MiB physical VMEM.
        vmem_limit_bytes = min(
            56 << 20,
            max(32 << 20, 4 * block_bytes + 3 * block_f32_bytes + (4 << 20)))

        partials = pl.pallas_call(
            functools.partial(
                _rmse_partial_kernel,
                tile_rows=tile_rows_eff,
                acc_rows=acc_rows,
                rows=rows,
                steps=steps,
                mask_needed=mask_needed,
            ),
            out_shape=jax.ShapeDtypeStruct((num_parallel, acc_rows, _LANES),
                                           jnp.float32),
            grid_spec=pltpu.PrefetchScalarGridSpec(
                num_scalar_prefetch=0,
                grid=(num_parallel, steps),
                in_specs=[in_spec, in_spec],
                out_specs=out_spec,
            ),
            compiler_params=pltpu.CompilerParams(
                dimension_semantics=("parallel", "arbitrary"),
                vmem_limit_bytes=vmem_limit_bytes,
            ),
            cost_estimate=pl.CostEstimate(
                flops=3 * full,
                transcendentals=0,
                bytes_accessed=2 * full * itemsize + out_bytes,
            ),
        )(yhat2d, y2d)

        total = total + partials.sum()

    if tail > 0:
        # <128 leftover elements: trivially reduced outside the kernel.
        dt = (flat_yhat[full:].astype(jnp.float32)
              - flat_y[full:].astype(jnp.float32))
        total = total + jnp.sum(dt * dt)

    # Single final mean + sqrt, matching torch.sqrt(nn.MSELoss()(yhat, y)).
    return jnp.sqrt(total / jnp.float32(n))


if __name__ == "__main__":
    key = jax.random.PRNGKey(0)
    k1, k2, k3, k4, k5, k6 = jax.random.split(key, 6)

    # Small, spec-consistent prediction/target pair (NCHW-like). n = 2048 is a
    # multiple of 128 -> no tail, single full tile, hot path only.
    shape = (2, 4, 16, 16)
    yhat = jax.random.normal(k1, shape, dtype=jnp.float32)
    y = jax.random.normal(k2, shape, dtype=jnp.float32)
    loss = rmse_loss(yhat, y)
    jax.block_until_ready(loss)
    ref = jnp.sqrt(jnp.mean((yhat - y) ** 2))
    assert jnp.allclose(loss, ref, rtol=1e-5, atol=1e-6), (loss, ref)

    # Ragged shape: exercises the wrapper-side tail reduce and the in-kernel
    # partial-tile row mask (cold path).
    shape2 = (8, 300, 127)
    yhat2 = jax.random.normal(k3, shape2, dtype=jnp.float32)
    y2 = jax.random.normal(k4, shape2, dtype=jnp.float32)
    loss2 = rmse_loss(yhat2, y2)
    jax.block_until_ready(loss2)
    ref2 = jnp.sqrt(jnp.mean((yhat2 - y2) ** 2))
    assert jnp.allclose(loss2, ref2, rtol=1e-4, atol=1e-6), (loss2, ref2)

    # Medium shape: multiple grid steps -> exercises the resident-accumulator
    # init / accumulate path across the reduction axis.
    shape3 = (16, 512, 256)
    yhat3 = jax.random.normal(k5, shape3, dtype=jnp.float32)
    y3 = jax.random.normal(k6, shape3, dtype=jnp.float32)
    loss3 = rmse_loss(yhat3, y3)
    jax.block_until_ready(loss3)
    ref3 = jnp.sqrt(jnp.mean((yhat3 - y3) ** 2))
    assert jnp.allclose(loss3, ref3, rtol=1e-4, atol=1e-6), (loss3, ref3)

    print("KERNEL_OK")
</pallas_src>

<mosaic_0001>
module attributes {stable_mosaic.version = 11 : i64} {
  func.func @_rmse_partial_kernel(%arg0: i32, %arg1: i32, %arg2: memref<16x128xf32, #tpu.memory_space<vmem>>, %arg3: memref<16x128xf32, #tpu.memory_space<vmem>>, %arg4: memref<1x8x128xf32, #tpu.memory_space<vmem>>) attributes {dimension_semantics = [#tpu.dimension_semantics<parallel>, #tpu.dimension_semantics<arbitrary>], iteration_bounds = array<i64: 1, 1>, scalar_prefetch = 0 : i64, scratch_operands = 0 : i64, tpu.core_type = #tpu.core_type<tc>, window_params = [{transform_indices = @transform_0, window_bounds = array<i64: 16, 128>}, {transform_indices = @transform_1, window_bounds = array<i64: 16, 128>}, {transform_indices = @transform_2, window_bounds = array<i64: 1, 8, 128>}]} {
    %c0_i32 = arith.constant 0 : i32
    %0 = arith.cmpi eq, %arg1, %c0_i32 : i32
    %1 = arith.extui %0 : i1 to i32
    %c0_i32_0 = arith.constant 0 : i32
    %2 = arith.cmpi ne, %1, %c0_i32_0 : i32
    scf.if %2 {
      %cst_10 = arith.constant 0.000000e+00 : f32
      %13 = vector.broadcast %cst_10 : f32 to vector<1x8x128xf32>
      %c0_11 = arith.constant 0 : index
      %c0_12 = arith.constant 0 : index
      %c0_13 = arith.constant 0 : index
      %14 = vector.load %arg4[%c0_11, %c0_12, %c0_13] : memref<1x8x128xf32, #tpu.memory_space<vmem>>, vector<1x8x128xf32>
      tpu.vector_store %arg4[%c0_11, %c0_12, %c0_13], %13 {strides = array<i32>} : memref<1x8x128xf32, #tpu.memory_space<vmem>>, vector<1x8x128xf32>,
    } else {
    }
    %c0 = arith.constant 0 : index
    %c0_1 = arith.constant 0 : index
    %3 = vector.load %arg2[%c0, %c0_1] : memref<16x128xf32, #tpu.memory_space<vmem>>, vector<16x128xf32>
    %c0_2 = arith.constant 0 : index
    %c0_3 = arith.constant 0 : index
    %4 = vector.load %arg3[%c0_2, %c0_3] : memref<16x128xf32, #tpu.memory_space<vmem>>, vector<16x128xf32>
    %5 = arith.subf %3, %4 : vector<16x128xf32>
    %6 = arith.mulf %5, %5 : vector<16x128xf32>
    %c0_4 = arith.constant 0 : index
    %c0_5 = arith.constant 0 : index
    %c0_6 = arith.constant 0 : index
    %7 = vector.load %arg4[%c0_4, %c0_5, %c0_6] : memref<1x8x128xf32, #tpu.memory_space<vmem>>, vector<1x8x128xf32>
    %8 = vector.shape_cast %6 : vector<16x128xf32> to vector<2x8x128xf32>
    %cst = arith.constant dense<0.000000e+00> : vector<8x128xf32>
    %9 = vector.multi_reduction <add>, %8, %cst [0] : vector<2x8x128xf32> to vector<8x128xf32>
    %10 = vector.shape_cast %9 : vector<8x128xf32> to vector<1x8x128xf32>
    %11 = arith.addf %7, %10 : vector<1x8x128xf32>
    %c0_7 = arith.constant 0 : index
    %c0_8 = arith.constant 0 : index
    %c0_9 = arith.constant 0 : index
    %12 = vector.load %arg4[%c0_7, %c0_8, %c0_9] : memref<1x8x128xf32, #tpu.memory_space<vmem>>, vector<1x8x128xf32>
    tpu.vector_store %arg4[%c0_7, %c0_8, %c0_9], %11 {strides = array<i32>} : memref<1x8x128xf32, #tpu.memory_space<vmem>>, vector<1x8x128xf32>,
    return
  }
  func.func @transform_0(%arg0: i32, %arg1: i32) -> (i32, i32) {
    %c1_i32 = arith.constant 1 : i32
    %0 = arith.muli %arg0, %c1_i32 : i32
    %1 = arith.addi %0, %arg1 : i32
    %c0_i32 = arith.constant 0 : i32
    %c0_i32_0 = arith.constant 0 : i32
    return %1, %c0_i32 : i32, i32
  }
  func.func @transform_1(%arg0: i32, %arg1: i32) -> (i32, i32) {
    %c1_i32 = arith.constant 1 : i32
    %0 = arith.muli %arg0, %c1_i32 : i32
    %1 = arith.addi %0, %arg1 : i32
    %c0_i32 = arith.constant 0 : i32
    %c0_i32_0 = arith.constant 0 : i32
    return %1, %c0_i32 : i32, i32
  }
  func.func @transform_2(%arg0: i32, %arg1: i32) -> (i32, i32, i32) {
    %c0_i32 = arith.constant 0 : i32
    %c0_i32_0 = arith.constant 0 : i32
    %c0_i32_1 = arith.constant 0 : i32
    return %arg0, %c0_i32, %c0_i32_0 : i32, i32, i32
  }
}

</mosaic_0001>

<llo_original>
// kernel: tpu_custom_call.1
$region0: #{tpu_custom_call.1}
  #allocation0 [shape = 'u32[]', space=smem, size = 0x4, offset = 0x4, fixed_abs, tag = 'smem constant byte address 0x4 - core index']
  #allocation1 [shape = 'u32[144,128]{1,0:T(1,128)}', space=vmem, size = 0x12000, scoped, tag = 'internal scratch']
  %s0 = inlined_call_operand.hbm [shape: f32[16,128], index: 0, kind: input, shape index: {}]
  %s1 = inlined_call_operand.hbm [shape: f32[16,128], index: 1, kind: input, shape index: {}]
  %s2 = inlined_call_operand.hbm [shape: f32[1,8,128], index: 2, kind: output, shape index: {}]
  %s3 = sld [smem:[#allocation0]]
  $region30: #{tpu_custom_call.1} parent=0
    _
  %s5 = ssub.s32 1, %s3
  %s6 = scalar_select 0, %s5, %s3
  $region1: #{tpu_custom_call.1} parent=0
    #allocation2 [shape = 'u8[8192]{0}', space=vmem, size = 0x2000, scoped, tag = 'input window, operand 0, single buffered']
    #allocation3 [shape = 's32[1]{0}', space=sflag, size = 0x4, scoped, tag = 'scoped memory for tpu_custom_call.1']
    #allocation4 [shape = 's32[1]{0}', space=sflag, size = 0x4, scoped, tag = 'scoped memory for tpu_custom_call.1']
    #allocation5 [shape = 'u8[8192]{0}', space=vmem, size = 0x2000, scoped, tag = 'input window, operand 1, single buffered']
    #allocation6 [shape = 's32[1]{0}', space=sflag, size = 0x4, scoped, tag = 'scoped memory for tpu_custom_call.1']
    #allocation7 [shape = 'u8[4096]{0}', space=vmem, size = 0x1000, scoped, tag = 'output window, operand 0, single buffered']
    %7 = vsyncpa [#allocation3], 0
    %8 = vsyncpa [#allocation6], 0
    %9 = vsyncpa [#allocation4], 0
    // Predicated region
    $region2: #{tpu_custom_call.1} parent=1 // pred_check
      _
    $region3: #{tpu_custom_call.1} parent=1 // pred_check_branch
      %11 = sbr.rel (0) target = $region5
    $region4: #{tpu_custom_call.1} parent=1 // pred_region
      %s12 = sadd.s32 0, 0
      %s13 = smul.u32 2, %s12
      %s15 = ssub.s32 256, 256
      %16 = vsyncadd [#allocation3], %s15
      %s17 = smul.addr %s13, 128
      %s18 = scalar_lea.hbm %s0, %s17
      %s19 = sshll.u32 [#allocation2], 4
      %s20 = int_to_ptr.vmem [resolvable:$true] %s19
      %25 = dma.hbm_to_vmem [thread:$0]  %s18, 256, %s20, [#allocation3], 128, 128, 8
    $region5: #{tpu_custom_call.1} parent=1 // pred_fallthru
      _
    // Predicated region
    $region6: #{tpu_custom_call.1} parent=1 // pred_check
      _
    $region7: #{tpu_custom_call.1} parent=1 // pred_check_branch
      %27 = sbr.rel (0) target = $region9
    $region8: #{tpu_custom_call.1} parent=1 // pred_region
      %s28 = sadd.s32 0, 0
      %s29 = smul.u32 2, %s28
      %s31 = ssub.s32 256, 256
      %32 = vsyncadd [#allocation6], %s31
      %s33 = smul.addr %s29, 128
      %s34 = scalar_lea.hbm %s1, %s33
      %s35 = sshll.u32 [#allocation5], 4
      %s36 = int_to_ptr.vmem [resolvable:$true] %s35
      %41 = dma.hbm_to_vmem [thread:$0]  %s34, 256, %s36, [#allocation6], 128, 128, 8
    $region9: #{tpu_custom_call.1} parent=1 // pred_fallthru
      _
    // Predicated region
    $region10: #{tpu_custom_call.1} parent=1 // pred_check
      _
    $region11: #{tpu_custom_call.1} parent=1 // pred_check_branch
      %43 = sbr.rel (0) target = $region13
    $region12: #{tpu_custom_call.1} parent=1 // pred_region
      %44 = dma.done [#allocation3], 256
    $region13: #{tpu_custom_call.1} parent=1 // pred_fallthru
      _
    // Predicated region
    $region14: #{tpu_custom_call.1} parent=1 // pred_check
      _
    $region15: #{tpu_custom_call.1} parent=1 // pred_check_branch
      %46 = sbr.rel (0) target = $region17
    $region16: #{tpu_custom_call.1} parent=1 // pred_region
      %47 = dma.done [#allocation6], 256
    $region17: #{tpu_custom_call.1} parent=1 // pred_fallthru
      _
    %s48 = sadd.s32 0, 0
    %s49 = smul.u32 2, %s48
    %s50 = sadd.s32 0, 0
    %s51 = smul.u32 2, %s50
    %p52 = scmp.eq.s32.totalorder 0, 0
    // Predicated region
    $region18: #{tpu_custom_call.1} parent=1 // pred_check
      %p53 = pneg %p52
    $region19: #{tpu_custom_call.1} parent=1 // pred_check_branch
      %55 = sbr.rel (%p53) target = $region21
    $region20: #{tpu_custom_call.1} parent=1 // pred_region
      %56 = vst [vmem:[#allocation7] sm:$0xff] 0.0
    $region21: #{tpu_custom_call.1} parent=1 // pred_fallthru
      _
    %v57 = vld [vmem:[#allocation2] sm:$0xff]
    %v58 = vld [vmem:[#allocation2 + $0x8] sm:$0xff]
    %v59 = vld [vmem:[#allocation5] sm:$0xff]
    %v60 = vld [vmem:[#allocation5 + $0x8] sm:$0xff]
    %v61 = vsub.f32 %v57, %v59
    %v62 = vsub.f32 %v58, %v60
    %v63 = vmul.f32 %v61, %v61
    %v64 = vmul.f32 %v62, %v62
    %v65 = vld [vmem:[#allocation7] sm:$0xff]
    %v66 = vadd.f32 %v63, %v64
    %v67 = vadd.f32 %v65, %v66
    %68 = vst [vmem:[#allocation7] sm:$0xff] %v67
    // Predicated region
    $region22: #{tpu_custom_call.1} parent=1 // pred_check
      _
    $region23: #{tpu_custom_call.1} parent=1 // pred_check_branch
      %70 = sbr.rel (0) target = $region25
    $region24: #{tpu_custom_call.1} parent=1 // pred_region
      %s72 = ssub.s32 128, 128
      %73 = vsyncadd [#allocation4], %s72
      %s75 = sshll.u32 [#allocation7], 4
      %s76 = int_to_ptr.vmem [resolvable:$true] %s75
      %78 = dma.vmem_to_hbm [thread:$0]  %s76, 128, %s2, [#allocation4]
    $region25: #{tpu_custom_call.1} parent=1 // pred_fallthru
      _
    // Predicated region
    $region26: #{tpu_custom_call.1} parent=1 // pred_check
      _
    $region27: #{tpu_custom_call.1} parent=1 // pred_check_branch
      %80 = sbr.rel (0) target = $region29
    $region28: #{tpu_custom_call.1} parent=1 // pred_region
      %81 = dma.done [#allocation4], 128
    $region29: #{tpu_custom_call.1} parent=1 // pred_fallthru
      _
    %82 = vsyncpa [#allocation3], 1
    %83 = vsyncpa [#allocation6], 1
    %84 = vsyncpa [#allocation4], 1

</llo_original>
